<compile_context>
chip_gen: v7x
topology: tpu7x:2x2x1
jax: 0.10.0
libtpu: 0.0.40
codegen_flags: <defaults>
</compile_context>

<pallas_src>
import functools
import math

import jax
import jax.numpy as jnp
from jax.experimental import pallas as pl
from jax.experimental.pallas import tpu as pltpu


def _entropy_kernel(x_ref, o_ref, acc_ref, *, c, tile_rows, tiles_per_split,
                    spatial, has_pad, approx_recip):
    p = pl.program_id(1)          # spatial split (parallel, for v7x 2nd core)
    k = pl.program_id(2)          # reduction step within the split (arbitrary)

    @pl.when(k == 0)
    def _():
        acc_ref[...] = jnp.zeros_like(acc_ref)

    # Unrolled channel reduction: C is tiny (e.g. 4), so keep it as plain VPU
    # max/add over dense (tile_rows, 128) slices — no cross-sublane XLU work.
    xs = [x_ref[0, ci].astype(jnp.float32) for ci in range(c)]

    m = xs[0]
    for ci in range(1, c):
        m = jnp.maximum(m, xs[ci])

    s = jnp.zeros_like(m)
    sey = jnp.zeros_like(m)
    for ci in range(c):
        y = xs[ci] - m
        e = jnp.exp(y)
        s = s + e
        sey = sey + e * y

    # numerically-stable per-position entropy: log(s) - sum(e*y)/s
    ent = jnp.log(s) - sey * pl.reciprocal(s, approx=approx_recip)  # (Ts, 128)

    if has_pad:
        tile_idx = p * tiles_per_split + k
        tile_start = tile_idx * (tile_rows * 128)
        on_boundary = tile_start + tile_rows * 128 > spatial

        @pl.when(jnp.logical_not(on_boundary))
        def _():
            acc_ref[...] += ent                         # fast path: no masking

        @pl.when(on_boundary)
        def _():
            row = jax.lax.broadcasted_iota(jnp.int32, (tile_rows, 128), 0)
            lane = jax.lax.broadcasted_iota(jnp.int32, (tile_rows, 128), 1)
            pos = tile_start + row * 128 + lane
            acc_ref[...] += jnp.where(pos < spatial, ent, 0.0)
    else:
        acc_ref[...] += ent

    # Deferred scalar reduce: one cross-lane reduction + one store per
    # (batch, split) instead of per grid step.
    @pl.when(k == tiles_per_split - 1)
    def _():
        rows = jnp.sum(acc_ref[...], axis=1, keepdims=True)    # (Ts, 1)
        total = jnp.sum(rows, axis=0, keepdims=True)           # (1, 1)
        o_ref[...] = total[None, None, :, :]                   # (1, 1, 1, 1)


def _round_up(v, m):
    return ((v + m - 1) // m) * m


def entropy_loss(x, *, n_splits=2, max_tile_rows=1024, approx_reciprocal=True,
                 vmem_block_budget_bytes=None):
    """Entropy loss matching EntropyLoss.forward for (N, C, *spatial) inputs."""
    n, c = int(x.shape[0]), int(x.shape[1])
    spatial = int(math.prod(x.shape[2:]))          # 1 for 2-D (N, C) inputs

    # --- per-generation VMEM sizing (v7x has only 64 MiB / TensorCore) ------
    try:
        vmem_cap = int(pltpu.get_tpu_info().vmem_capacity_bytes)
    except Exception:
        vmem_cap = 64 * 1024 * 1024                # conservative fallback
    vmem_limit = min(vmem_cap // 2, 64 * 1024 * 1024)
    if vmem_block_budget_bytes is None:
        vmem_block_budget_bytes = min(vmem_limit // 4, 8 * 1024 * 1024)

    itemsize = x.dtype.itemsize
    # double-buffered input block + f32 live temporaries (channel slices,
    # m/s/sey/y/e/ent and the f32 accumulator scratch), per 128-lane row:
    bytes_per_row = 2 * c * 128 * itemsize + (c + 8) * 128 * 4
    ts_max = max(8, min(max_tile_rows,
                        (vmem_block_budget_bytes // bytes_per_row) // 8 * 8))

    # --- dense spatial tiling: rows on sublanes, 128 lanes -----------------
    rows_needed = -(-spatial // 128)               # cdiv(spatial, 128)
    if rows_needed < 2 * 8:                        # too small to split usefully
        n_splits = 1
    rows_per_split = -(-rows_needed // n_splits)
    tile_rows = min(ts_max, _round_up(rows_per_split, 8))
    tiles_per_split = -(-rows_per_split // tile_rows)
    rows_pad = n_splits * tiles_per_split * tile_rows
    spatial_pad = rows_pad * 128
    has_pad = spatial_pad > spatial

    # Single flatten + zero-pad pass at native dtype, un-padded C.  Padded
    # positions are finite (0.0) and masked out inside the kernel.
    xf = x.reshape(n, c, spatial)
    if has_pad:
        xf = jnp.pad(xf, ((0, 0), (0, 0), (0, spatial_pad - spatial)))
    xt = xf.reshape(n, c, rows_pad, 128)

    kernel = functools.partial(
        _entropy_kernel, c=c, tile_rows=tile_rows,
        tiles_per_split=tiles_per_split, spatial=spatial, has_pad=has_pad,
        approx_recip=approx_reciprocal)

    partials = pl.pallas_call(
        kernel,
        out_shape=jax.ShapeDtypeStruct((n, n_splits, 1, 1), jnp.float32),
        grid_spec=pltpu.PrefetchScalarGridSpec(
            num_scalar_prefetch=0,
            grid=(n, n_splits, tiles_per_split),
            in_specs=[pl.BlockSpec(
                (1, c, tile_rows, 128),
                lambda i, p, k: (i, 0, p * tiles_per_split + k, 0))],
            out_specs=pl.BlockSpec((1, 1, 1, 1), lambda i, p, k: (i, p, 0, 0)),
            scratch_shapes=[pltpu.VMEM((tile_rows, 128), jnp.float32)],
        ),
        compiler_params=pltpu.CompilerParams(
            dimension_semantics=("parallel", "parallel", "arbitrary"),
            vmem_limit_bytes=vmem_limit,
        ),
    )(xt)

    return jnp.sum(partials) / jnp.float32(n * spatial)


def _reference(x):
    # pure-JAX reference mirroring the PyTorch module
    p = jax.nn.softmax(x, axis=1)
    logp = jax.nn.log_softmax(x, axis=1)
    return jnp.mean(-jnp.sum(p * logp, axis=1))


if __name__ == "__main__":
    # 1) NCHW input matching the module's typical use; tight check with the
    #    exact-reciprocal path, then the default approx-EUP path.
    x = jax.random.normal(jax.random.PRNGKey(0), (2, 4, 16, 16), dtype=jnp.float32)
    ref = _reference(x)

    loss_exact = entropy_loss(x, approx_reciprocal=False)
    jax.block_until_ready(loss_exact)
    assert jnp.allclose(loss_exact, ref, rtol=1e-5, atol=1e-5), (loss_exact, ref)

    loss = entropy_loss(x)
    jax.block_until_ready(loss)
    assert jnp.allclose(loss, ref, rtol=5e-3, atol=5e-3), (loss, ref)

    # 2) N=1 with spatial not a multiple of the tile: exercises the spatial
    #    split axis (v7x) plus both mask-free and boundary-masked branches.
    x2 = jax.random.normal(jax.random.PRNGKey(1), (1, 4, 40, 50), dtype=jnp.float32)
    loss2 = entropy_loss(x2)
    jax.block_until_ready(loss2)
    ref2 = _reference(x2)
    assert jnp.allclose(loss2, ref2, rtol=5e-3, atol=5e-3), (loss2, ref2)

    # 3) forced small tile: multi-step reduction axis, fully-padded tail tile,
    #    odd channel count through the unrolled channel loop.
    x3 = jax.random.normal(jax.random.PRNGKey(2), (2, 5, 33, 77), dtype=jnp.float32)
    loss3 = entropy_loss(x3, max_tile_rows=8)
    jax.block_until_ready(loss3)
    ref3 = _reference(x3)
    assert jnp.allclose(loss3, ref3, rtol=5e-3, atol=5e-3), (loss3, ref3)

    # 4) bf16 input streamed in native dtype (cast to f32 inside the kernel).
    x4 = jax.random.normal(jax.random.PRNGKey(3), (2, 4, 64, 64)).astype(jnp.bfloat16)
    loss4 = entropy_loss(x4)
    jax.block_until_ready(loss4)
    ref4 = _reference(x4.astype(jnp.float32))
    assert jnp.allclose(loss4, ref4, rtol=5e-3, atol=5e-3), (loss4, ref4)

    print("KERNEL_OK")
</pallas_src>

<mosaic_0001>
module attributes {stable_mosaic.version = 11 : i64} {
  func.func @_entropy_kernel(%arg0: i32, %arg1: i32, %arg2: i32, %arg3: memref<1x4x8x128xf32, #tpu.memory_space<vmem>>, %arg4: memref<1x1x1x1xf32, #tpu.memory_space<vmem>>, %arg5: memref<8x128xf32, #tpu.memory_space<vmem>>) attributes {dimension_semantics = [#tpu.dimension_semantics<parallel>, #tpu.dimension_semantics<parallel>, #tpu.dimension_semantics<arbitrary>], iteration_bounds = array<i64: 2, 1, 1>, scalar_prefetch = 0 : i64, scratch_operands = 1 : i64, tpu.core_type = #tpu.core_type<tc>, window_params = [{transform_indices = @transform_0, window_bounds = array<i64: 1, 4, 8, 128>}, {transform_indices = @transform_1, window_bounds = array<i64: 1, 1, 1, 1>}]} {
    %c0_i32 = arith.constant 0 : i32
    %0 = arith.cmpi eq, %arg2, %c0_i32 : i32
    %1 = arith.extui %0 : i1 to i32
    %c0_i32_0 = arith.constant 0 : i32
    %2 = arith.cmpi ne, %1, %c0_i32_0 : i32
    scf.if %2 {
      %cst_19 = arith.constant 0.000000e+00 : f32
      %53 = vector.broadcast %cst_19 : f32 to vector<8x128xf32>
      %c0_20 = arith.constant 0 : index
      %c0_21 = arith.constant 0 : index
      %54 = vector.load %arg5[%c0_20, %c0_21] : memref<8x128xf32, #tpu.memory_space<vmem>>, vector<8x128xf32>
      tpu.vector_store %arg5[%c0_20, %c0_21], %53 {strides = array<i32>} : memref<8x128xf32, #tpu.memory_space<vmem>>, vector<8x128xf32>,
    } else {
    }
    %c0 = arith.constant 0 : index
    %c0_1 = arith.constant 0 : index
    %c0_2 = arith.constant 0 : index
    %c0_3 = arith.constant 0 : index
    %3 = vector.load %arg3[%c0, %c0_1, %c0_2, %c0_3] : memref<1x4x8x128xf32, #tpu.memory_space<vmem>>, vector<1x1x8x128xf32>
    %4 = vector.shape_cast %3 : vector<1x1x8x128xf32> to vector<8x128xf32>
    %c0_4 = arith.constant 0 : index
    %c1 = arith.constant 1 : index
    %c0_5 = arith.constant 0 : index
    %c0_6 = arith.constant 0 : index
    %5 = vector.load %arg3[%c0_4, %c1, %c0_5, %c0_6] : memref<1x4x8x128xf32, #tpu.memory_space<vmem>>, vector<1x1x8x128xf32>
    %6 = vector.shape_cast %5 : vector<1x1x8x128xf32> to vector<8x128xf32>
    %c0_7 = arith.constant 0 : index
    %c2 = arith.constant 2 : index
    %c0_8 = arith.constant 0 : index
    %c0_9 = arith.constant 0 : index
    %7 = vector.load %arg3[%c0_7, %c2, %c0_8, %c0_9] : memref<1x4x8x128xf32, #tpu.memory_space<vmem>>, vector<1x1x8x128xf32>
    %8 = vector.shape_cast %7 : vector<1x1x8x128xf32> to vector<8x128xf32>
    %c0_10 = arith.constant 0 : index
    %c3 = arith.constant 3 : index
    %c0_11 = arith.constant 0 : index
    %c0_12 = arith.constant 0 : index
    %9 = vector.load %arg3[%c0_10, %c3, %c0_11, %c0_12] : memref<1x4x8x128xf32, #tpu.memory_space<vmem>>, vector<1x1x8x128xf32>
    %10 = vector.shape_cast %9 : vector<1x1x8x128xf32> to vector<8x128xf32>
    %11 = arith.maximumf %4, %6 : vector<8x128xf32>
    %12 = arith.maximumf %11, %8 : vector<8x128xf32>
    %13 = arith.maximumf %12, %10 : vector<8x128xf32>
    %cst = arith.constant 0.000000e+00 : f32
    %14 = vector.broadcast %cst : f32 to vector<8x128xf32>
    %cst_13 = arith.constant 0.000000e+00 : f32
    %15 = vector.broadcast %cst_13 : f32 to vector<8x128xf32>
    %16 = arith.subf %4, %13 : vector<8x128xf32>
    %17 = math.exp %16 : vector<8x128xf32>
    %18 = arith.addf %14, %17 : vector<8x128xf32>
    %19 = arith.mulf %17, %16 : vector<8x128xf32>
    %20 = arith.addf %15, %19 : vector<8x128xf32>
    %21 = arith.subf %6, %13 : vector<8x128xf32>
    %22 = math.exp %21 : vector<8x128xf32>
    %23 = arith.addf %18, %22 : vector<8x128xf32>
    %24 = arith.mulf %22, %21 : vector<8x128xf32>
    %25 = arith.addf %20, %24 : vector<8x128xf32>
    %26 = arith.subf %8, %13 : vector<8x128xf32>
    %27 = math.exp %26 : vector<8x128xf32>
    %28 = arith.addf %23, %27 : vector<8x128xf32>
    %29 = arith.mulf %27, %26 : vector<8x128xf32>
    %30 = arith.addf %25, %29 : vector<8x128xf32>
    %31 = arith.subf %10, %13 : vector<8x128xf32>
    %32 = math.exp %31 : vector<8x128xf32>
    %33 = arith.addf %28, %32 : vector<8x128xf32>
    %34 = arith.mulf %32, %31 : vector<8x128xf32>
    %35 = arith.addf %30, %34 : vector<8x128xf32>
    %36 = math.log %33 : vector<8x128xf32>
    %37 = tpu.reciprocal %33 : vector<8x128xf32> -> vector<8x128xf32>
    %38 = arith.mulf %35, %37 : vector<8x128xf32>
    %39 = arith.subf %36, %38 : vector<8x128xf32>
    %c1_i32 = arith.constant 1 : i32
    %40 = arith.muli %arg1, %c1_i32 : i32
    %41 = arith.addi %40, %arg2 : i32
    %c1024_i32 = arith.constant 1024 : i32
    %42 = arith.muli %41, %c1024_i32 : i32
    %c1024_i32_14 = arith.constant 1024 : i32
    %43 = arith.addi %42, %c1024_i32_14 : i32
    %c256_i32 = arith.constant 256 : i32
    %44 = arith.cmpi sgt, %43, %c256_i32 : i32
    %true = arith.constant true
    %45 = arith.xori %44, %true : i1
    %46 = arith.extui %45 : i1 to i32
    %c0_i32_15 = arith.constant 0 : i32
    %47 = arith.cmpi ne, %46, %c0_i32_15 : i32
    scf.if %47 {
      %c0_19 = arith.constant 0 : index
      %c0_20 = arith.constant 0 : index
      %53 = vector.load %arg5[%c0_19, %c0_20] : memref<8x128xf32, #tpu.memory_space<vmem>>, vector<8x128xf32>
      %54 = arith.addf %53, %39 : vector<8x128xf32>
      %c0_21 = arith.constant 0 : index
      %c0_22 = arith.constant 0 : index
      %55 = vector.load %arg5[%c0_21, %c0_22] : memref<8x128xf32, #tpu.memory_space<vmem>>, vector<8x128xf32>
      tpu.vector_store %arg5[%c0_21, %c0_22], %54 {strides = array<i32>} : memref<8x128xf32, #tpu.memory_space<vmem>>, vector<8x128xf32>,
    } else {
    }
    %48 = arith.extui %44 : i1 to i32
    %c0_i32_16 = arith.constant 0 : i32
    %49 = arith.cmpi ne, %48, %c0_i32_16 : i32
    scf.if %49 {
      %53 = tpu.iota {dimensions = array<i32: 0>} : vector<8x128xi32>
      %54 = tpu.iota {dimensions = array<i32: 1>} : vector<8x128xi32>
      %c128_i32 = arith.constant 128 : i32
      %55 = vector.broadcast %c128_i32 : i32 to vector<8x128xi32>
      %56 = arith.muli %53, %55 : vector<8x128xi32>
      %57 = vector.broadcast %42 : i32 to vector<8x128xi32>
      %58 = arith.addi %57, %56 : vector<8x128xi32>
      %59 = arith.addi %58, %54 : vector<8x128xi32>
      %c0_19 = arith.constant 0 : index
      %c0_20 = arith.constant 0 : index
      %60 = vector.load %arg5[%c0_19, %c0_20] : memref<8x128xf32, #tpu.memory_space<vmem>>, vector<8x128xf32>
      %c256_i32_21 = arith.constant 256 : i32
      %61 = vector.broadcast %c256_i32_21 : i32 to vector<8x128xi32>
      %62 = arith.cmpi slt, %59, %61 : vector<8x128xi32>
      %cst_22 = arith.constant 0.000000e+00 : f32
      %63 = vector.broadcast %cst_22 : f32 to vector<8x128xf32>
      %64 = arith.select %62, %39, %63 : vector<8x128xi1>, vector<8x128xf32>
      %65 = arith.addf %60, %64 : vector<8x128xf32>
      %c0_23 = arith.constant 0 : index
      %c0_24 = arith.constant 0 : index
      %66 = vector.load %arg5[%c0_23, %c0_24] : memref<8x128xf32, #tpu.memory_space<vmem>>, vector<8x128xf32>
      tpu.vector_store %arg5[%c0_23, %c0_24], %65 {strides = array<i32>} : memref<8x128xf32, #tpu.memory_space<vmem>>, vector<8x128xf32>,
    } else {
    }
    %c0_i32_17 = arith.constant 0 : i32
    %50 = arith.cmpi eq, %arg2, %c0_i32_17 : i32
    %51 = arith.extui %50 : i1 to i32
    %c0_i32_18 = arith.constant 0 : i32
    %52 = arith.cmpi ne, %51, %c0_i32_18 : i32
    scf.if %52 {
      %c0_19 = arith.constant 0 : index
      %c0_20 = arith.constant 0 : index
      %53 = vector.load %arg5[%c0_19, %c0_20] : memref<8x128xf32, #tpu.memory_space<vmem>>, vector<8x128xf32>
      %cst_21 = arith.constant dense<0.000000e+00> : vector<8xf32>
      %54 = vector.multi_reduction <add>, %53, %cst_21 [1] : vector<8x128xf32> to vector<8xf32>
      %55 = vector.shape_cast %54 : vector<8xf32> to vector<8x1xf32>
      %cst_22 = arith.constant dense<0.000000e+00> : vector<1xf32>
      %56 = vector.multi_reduction <add>, %55, %cst_22 [0] : vector<8x1xf32> to vector<1xf32>
      %57 = vector.shape_cast %56 : vector<1xf32> to vector<1x1xf32>
      %58 = vector.shape_cast %57 : vector<1x1xf32> to vector<1x1x1x1xf32>
      %c0_23 = arith.constant 0 : index
      %c0_24 = arith.constant 0 : index
      %c0_25 = arith.constant 0 : index
      %c0_26 = arith.constant 0 : index
      %59 = vector.load %arg4[%c0_23, %c0_24, %c0_25, %c0_26] : memref<1x1x1x1xf32, #tpu.memory_space<vmem>>, vector<1x1x1x1xf32>
      tpu.vector_store %arg4[%c0_23, %c0_24, %c0_25, %c0_26], %58 {strides = array<i32>} : memref<1x1x1x1xf32, #tpu.memory_space<vmem>>, vector<1x1x1x1xf32>,
    } else {
    }
    return
  }
  func.func @transform_0(%arg0: i32, %arg1: i32, %arg2: i32) -> (i32, i32, i32, i32) {
    %c1_i32 = arith.constant 1 : i32
    %0 = arith.muli %arg1, %c1_i32 : i32
    %1 = arith.addi %0, %arg2 : i32
    %c0_i32 = arith.constant 0 : i32
    %c0_i32_0 = arith.constant 0 : i32
    %c0_i32_1 = arith.constant 0 : i32
    return %arg0, %c0_i32, %1, %c0_i32_0 : i32, i32, i32, i32
  }
  func.func @transform_1(%arg0: i32, %arg1: i32, %arg2: i32) -> (i32, i32, i32, i32) {
    %c0_i32 = arith.constant 0 : i32
    %c0_i32_0 = arith.constant 0 : i32
    %c0_i32_1 = arith.constant 0 : i32
    return %arg0, %arg1, %c0_i32, %c0_i32_0 : i32, i32, i32, i32
  }
}

</mosaic_0001>

<llo_original>
// kernel: tpu_custom_call.1
$region0: #{tpu_custom_call.1}
  #allocation0 [shape = 'u32[]', space=smem, size = 0x4, offset = 0x4, fixed_abs, tag = 'smem constant byte address 0x4 - core index']
  #allocation1 [shape = 'u32[144,128]{1,0:T(1,128)}', space=vmem, size = 0x12000, scoped, tag = 'internal scratch']
  #allocation2 [shape = 'f32[8,128]{1,0:T(8,128)}', space=vmem, size = 0x1000, scoped, tag = 'scratch operand']
  %s0 = inlined_call_operand.hbm [shape: f32[2,4,8,128], index: 0, kind: input, shape index: {}]
  %s1 = inlined_call_operand.vmem [shape: f32[2,1,1,1], index: 1, kind: output, shape index: {}]
  %s2 = sld [smem:[#allocation0]]
  $region57: #{tpu_custom_call.1} parent=0
    _
  %s4 = ssub.s32 1, %s2
  %s5 = scalar_select 0, %s4, %s2
  $region1: #{tpu_custom_call.1} parent=0
    #allocation3 [shape = 'u8[32768]{0}', space=vmem, size = 0x8000, scoped, tag = 'input window, operand 0']
    #allocation4 [shape = 's32[2]{0}', space=sflag, size = 0x8, scoped, tag = 'scoped memory for tpu_custom_call.1']
    %6 = vsyncpa [#allocation4], 0
    %s7 = scalar_lea.sflag [#allocation4], 1
    %8 = vsyncpa %s7, 0
    loop: start=0, step=1, limit=4
    $region2: #{tpu_custom_call.1} parent=1 // loop_pre_header
      _
    $region3: #{tpu_custom_call.1} parent=1 // loop_header
      %s10 = sphi 0, %s14
      %p11 = scmp.ge.s32.totalorder %s10, 4
      %s17 = sphi 0, %s36
      %s18 = sphi 0, %s32
      %s19 = sphi 0, %s28
      %s20 = sphi 0, %s17
      %s21 = sphi 0, %s18
      %s22 = sphi 0, %s19
      %s23 = sphi 0, %s20
      %s24 = sphi 0, %s21
      %s25 = sphi 0, %s22
      %s43 = sphi 0, %s45
      %s46 = sphi 0, %s43
      %s47 = sphi 0, %s46
      %s63 = sphi 0, %s47
      %s71 = sphi 0, %s73
      %s74 = sphi 0, %s71
      %s75 = sphi 0, %s74
      %s91 = sphi 0, %s75
    $region4: #{tpu_custom_call.1} parent=1 // loop_header_branch
      %13 = sbr.rel (%p11) target = $region8
    $region5: #{tpu_custom_call.1} parent=1 // loop_body
      %s15 = ssub.s32 %s10, 1
      %s16 = ssub.s32 %s10, 2
      %s26 = sadd.s32 1, %s19
      %p27 = scmp.ge.s32.totalorder %s26, 1
      %s28 = scalar_select %p27, 0, %s26
      %s29 = sadd.s32 1, %s18
      %s30 = scalar_select %p27, %s29, %s18
      %p31 = scmp.ge.s32.totalorder %s30, 1
      %s32 = scalar_select %p31, 0, %s30
      %s33 = sadd.s32 1, %s17
      %s34 = scalar_select %p31, %s33, %s17
      %p35 = scmp.ge.s32.totalorder %s34, 2
      %s36 = scalar_select %p35, 0, %s34
      %s37 = sadd.s32 %s18, %s19
      %s38 = sadd.s32 %s32, %s28
      %s39 = ssub.s32 %s17, %s36
      %s40 = ssub.s32 %s37, %s38
      %s41 = sor.u32 %s39, %s40
      %p42 = scmp.eq.s32.totalorder %s41, 0
      %s44 = sadd.s32 %s43, 1
      %s45 = scalar_select %p42, %s43, %s44
      %p48 = pneg %p42
      %p49 = scmp.eq.s32.totalorder %s10, 1
      %p50 = por %p48, %p49
      %p51 = scmp.ne.s32.totalorder %s43, %s46
      %p52 = scmp.eq.s32.totalorder %s10, 0
      %p53 = por %p51, %p52
      %p54 = scmp.ne.s32.totalorder %s43, %s46
      %p55 = scmp.eq.s32.totalorder %s15, 1
      %p56 = por %p54, %p55
      %p57 = scmp.ne.s32.totalorder %s46, %s47
      %p58 = scmp.eq.s32.totalorder %s15, 0
      %p59 = por %p57, %p58
      %p60 = scmp.ne.s32.totalorder %s46, %s47
      %p61 = scmp.eq.s32.totalorder %s16, 1
      %p62 = por %p60, %p61
      %p64 = scmp.ne.s32.totalorder %s47, %s63
      %p65 = scmp.eq.s32.totalorder %s16, 0
      %p66 = por %p64, %p65
      %s67 = ssub.s32 %s17, %s36
      %s68 = ssub.s32 %s18, %s32
      %s69 = sor.u32 %s67, %s68
      %p70 = scmp.eq.s32.totalorder %s69, 0
      %s72 = sadd.s32 %s71, 1
      %s73 = scalar_select %p70, %s71, %s72
      %p76 = pneg %p70
      %p77 = scmp.eq.s32.totalorder %s10, 1
      %p78 = por %p76, %p77
      %p79 = scmp.ne.s32.totalorder %s71, %s74
      %p80 = scmp.eq.s32.totalorder %s10, 0
      %p81 = por %p79, %p80
      %p82 = scmp.ne.s32.totalorder %s71, %s74
      %p83 = scmp.eq.s32.totalorder %s15, 1
      %p84 = por %p82, %p83
      %p85 = scmp.ne.s32.totalorder %s74, %s75
      %p86 = scmp.eq.s32.totalorder %s15, 0
      %p87 = por %p85, %p86
      %p88 = scmp.ne.s32.totalorder %s74, %s75
      %p89 = scmp.eq.s32.totalorder %s16, 1
      %p90 = por %p88, %p89
      %p92 = scmp.ne.s32.totalorder %s75, %s91
      %p93 = scmp.eq.s32.totalorder %s16, 0
      %p94 = por %p92, %p93
      %p95 = scmp.le.s32.totalorder 1, %s10
      %p96 = scmp.lt.s32.totalorder %s10, 3
      %p97 = pnand %p95, %p96
      %p98 = pneg %p97
      // Predicated region
      $region9: #{tpu_custom_call.1} parent=5 // pred_check
        _
      $region10: #{tpu_custom_call.1} parent=5 // pred_check_branch
        %100 = sbr.rel (%p97) target = $region12
      $region11: #{tpu_custom_call.1} parent=5 // pred_region
        %s101 = ssub.s32 %s10, 1
      $region12: #{tpu_custom_call.1} parent=5 // pred_fallthru
        _
      %p102 = scmp.lt.s32.totalorder %s10, 2
      // Predicated region
      $region13: #{tpu_custom_call.1} parent=5 // pred_check
        %p103 = pneg %p102
      $region14: #{tpu_custom_call.1} parent=5 // pred_check_branch
        %105 = sbr.rel (%p103) target = $region16
      $region15: #{tpu_custom_call.1} parent=5 // pred_region
        // Predicated region
        $region17: #{tpu_custom_call.1} parent=15 // pred_check
          %p106 = pneg %p53
        $region18: #{tpu_custom_call.1} parent=15 // pred_check_branch
          %108 = sbr.rel (%p106) target = $region20
        $region19: #{tpu_custom_call.1} parent=15 // pred_region
          %s109 = sand.u32 %s43, 1
          %s110 = scalar_lea.sflag [#allocation4], %s109
          %s111 = sand.u32 %s43, 1
          %s112 = smul.addr %s111, 32
          %s113 = scalar_lea.vmem [#allocation3], %s112
          %s114 = sadd.s32 %s18, %s19
          %s116 = ssub.s32 512, 512
          %117 = vsyncadd %s110, %s116
          %s118 = smul.addr %s17, 4
          %s119 = sadd.s32 %s114, %s118
          %s120 = smul.addr %s119, 128
          %s121 = scalar_lea.hbm %s0, %s120
          %s122 = sshll.u32 %s113, 4
          %s123 = int_to_ptr.vmem [resolvable:$true] %s122
          %128 = dma.hbm_to_vmem [thread:$0]  %s121, 512, %s123, %s110, 128, 128, 8
        $region20: #{tpu_custom_call.1} parent=15 // pred_fallthru
          _
      $region16: #{tpu_custom_call.1} parent=5 // pred_fallthru
        _
      %p129 = scmp.le.s32.totalorder 1, %s10
      %p130 = scmp.lt.s32.totalorder %s10, 3
      %p131 = pnand %p129, %p130
      %p132 = pneg %p131
      // Predicated region
      $region21: #{tpu_custom_call.1} parent=5 // pred_check
        _
      $region22: #{tpu_custom_call.1} parent=5 // pred_check_branch
        %134 = sbr.rel (%p131) target = $region24
      $region23: #{tpu_custom_call.1} parent=5 // pred_region
        %s135 = ssub.s32 %s10, 1
        %s136 = sand.u32 %s46, 1
        %s137 = scalar_lea.sflag [#allocation4], %s136
        %s138 = sand.u32 %s46, 1
        %s139 = smul.addr %s138, 32
        %s140 = scalar_lea.vmem [#allocation3], %s139
        // Predicated region
        $region25: #{tpu_custom_call.1} parent=23 // pred_check
          %p141 = pneg %p59
        $region26: #{tpu_custom_call.1} parent=23 // pred_check_branch
          %143 = sbr.rel (%p141) target = $region28
        $region27: #{tpu_custom_call.1} parent=23 // pred_region
          %144 = dma.done %s137, 512
        $region28: #{tpu_custom_call.1} parent=23 // pred_fallthru
          _
        %s145 = sand.u32 %s46, 1
        %s146 = scalar_lea.sflag [#allocation4], %s145
        %s147 = sand.u32 %s46, 1
        %s148 = smul.addr %s147, 32
        %s149 = scalar_lea.vmem [#allocation3], %s148
        %p150 = pneg %p59
        %p151 = pneg %p56
        %p152 = pneg %p87
        %p153 = pneg %p84
        %p154 = scmp.lt.s32.totalorder %s20, 1
        %s155 = scalar_select %p154, %s20, 1
        %p156 = scmp.lt.s32.totalorder %s21, 0
        %s157 = scalar_select %p156, %s21, 0
        %s158 = sadd.s32 %s157, %s155
        %s159 = scalar_lea.vmem %s1, %s158
        %s160 = sadd.s32 %s21, %s22
        %p161 = scmp.lt.s32.totalorder %s20, 1
        %s162 = scalar_select %p161, %s20, 1
        %p163 = scmp.lt.s32.totalorder %s21, 0
        %s164 = scalar_select %p163, %s21, 0
        %s165 = sadd.s32 %s164, %s162
        %s166 = scalar_lea.vmem %s1, %s165
        %p167 = scmp.eq.s32.totalorder %s22, 0
        // Predicated region
        $region29: #{tpu_custom_call.1} parent=23 // pred_check
          %p168 = pneg %p167
        $region30: #{tpu_custom_call.1} parent=23 // pred_check_branch
          %170 = sbr.rel (%p168) target = $region32
        $region31: #{tpu_custom_call.1} parent=23 // pred_region
          %171 = vst [vmem:[#allocation2] sm:$0xff] 0.0
        $region32: #{tpu_custom_call.1} parent=23 // pred_fallthru
          _
        %v172 = vld [vmem:[%s140] sm:$0xff]
        %s173 = scalar_lea.vmem %s140, 8 [#allocation3]
        %v174 = vld [vmem:[%s173] sm:$0xff]
        %s175 = scalar_lea.vmem %s140, 16 [#allocation3]
        %v176 = vld [vmem:[%s175] sm:$0xff]
        %s177 = scalar_lea.vmem %s140, 24 [#allocation3]
        %v178 = vld [vmem:[%s177] sm:$0xff]
        %v179 = vmax.f32 %v172, %v174
        %v180 = vmax.f32 %v179, %v176
        %v181 = vmax.f32 %v180, %v178
        %v182 = vsub.f32 %v172, %v181
        %v183 = vmul.f32 %v182, 1.442695
        %v184 = vpow.pop %v183
        %v185 = vadd.f32 %v184, 0.0
        %v186 = vmul.f32 %v184, %v182
        %v187 = vadd.f32 %v186, 0.0
        %v188 = vsub.f32 %v174, %v181
        %v189 = vmul.f32 %v188, 1.442695
        %v190 = vpow.pop %v189
        %v191 = vadd.f32 %v185, %v190
        %v192 = vmul.f32 %v190, %v188
        %v193 = vadd.f32 %v187, %v192
        %v194 = vsub.f32 %v176, %v181
        %v195 = vmul.f32 %v194, 1.442695
        %v196 = vpow.pop %v195
        %v197 = vadd.f32 %v191, %v196
        %v198 = vmul.f32 %v196, %v194
        %v199 = vadd.f32 %v193, %v198
        %v200 = vsub.f32 %v178, %v181
        %v201 = vmul.f32 %v200, 1.442695
        %v202 = vpow.pop %v201
        %v203 = vadd.f32 %v197, %v202
        %v204 = vmul.f32 %v202, %v200
        %v205 = vadd.f32 %v199, %v204
        %v206 = vlog2.pop %v203
        %v207 = vmul.f32 %v206, 0.6931472
        %v208 = vrcp.pop %v203
        %v209 = vmul.f32 %v205, %v208
        %v210 = vsub.f32 %v207, %v209
        %s211 = sadd.s32 %s21, %s22
        %s212 = smul.u32 %s211, 1024
        %s213 = sadd.s32 %s212, 1024
        %p214 = scmp.gt.s32.totalorder %s213, 256
        %p215 = scmp.le.s32.totalorder %s213, 256
        // Predicated region
        $region33: #{tpu_custom_call.1} parent=23 // pred_check
          %p216 = pneg %p215
        $region34: #{tpu_custom_call.1} parent=23 // pred_check_branch
          %218 = sbr.rel (%p216) target = $region36
        $region35: #{tpu_custom_call.1} parent=23 // pred_region
          %v219 = vld [vmem:[#allocation2] sm:$0xff]
          %v220 = vadd.f32 %v219, %v210
          %221 = vst [vmem:[#allocation2] sm:$0xff] %v220
        $region36: #{tpu_custom_call.1} parent=23 // pred_fallthru
          _
        // Predicated region
        $region37: #{tpu_custom_call.1} parent=23 // pred_check
          %p222 = pneg %p214
        $region38: #{tpu_custom_call.1} parent=23 // pred_check_branch
          %224 = sbr.rel (%p222) target = $region40
        $region39: #{tpu_custom_call.1} parent=23 // pred_region
          %v225 = vlaneseq
          %v226 = vshrl.u32 %v225, 7
          %v227 = vlaneseq
          %v228 = vand.u32 %v227, 127
          %v229 = vmul.u32 %v226, 128
          %v230 = vstv %s212
          %v231 = vadd.s32 %v230, %v229
          %v232 = vadd.s32 %v231, %v228
          %v233 = vld [vmem:[#allocation2] sm:$0xff]
          %vm234 = vcmp.lt.s32.totalorder %v232, 256
          %v235 = vsel %vm234, %v210, 0.0
          %v236 = vadd.f32 %v233, %v235
          %237 = vst [vmem:[#allocation2] sm:$0xff] %v236
        $region40: #{tpu_custom_call.1} parent=23 // pred_fallthru
          _
        // Predicated region
        $region41: #{tpu_custom_call.1} parent=23 // pred_check
          %p238 = pneg %p167
        $region42: #{tpu_custom_call.1} parent=23 // pred_check_branch
          %240 = sbr.rel (%p238) target = $region44
        $region43: #{tpu_custom_call.1} parent=23 // pred_region
          %v241 = vld [vmem:[#allocation2] sm:$0xff]
          %242 = vadd.xlane.f32.xlu0 %v241
          %v243 = vpop.xlane.xlu0 %242
          %v244 = vrot.slane %v243, 4
          %v245 = vadd.f32 %v243, %v244
          %v246 = vrot.slane %v245, 2
          %v247 = vadd.f32 %v245, %v246
          %v248 = vrot.slane %v247, 1
          %v249 = vadd.f32 %v247, %v248
          %vm250 = vcmask 0
          %251 = vst.msk [vmem:[%s166] sm:$0x1] %vm250, %v249
        $region44: #{tpu_custom_call.1} parent=23 // pred_fallthru
          _
        %p252 = scmp.lt.s32.totalorder %s20, 1
        %s253 = scalar_select %p252, %s20, 1
        %p254 = scmp.lt.s32.totalorder %s21, 0
        %s255 = scalar_select %p254, %s21, 0
        %s256 = sadd.s32 %s255, %s253
        %s257 = scalar_lea.vmem %s1, %s256
        // Predicated region
        $region45: #{tpu_custom_call.1} parent=23 // pred_check
          %p258 = pneg %p84
        $region46: #{tpu_custom_call.1} parent=23 // pred_check_branch
          %260 = sbr.rel (%p258) target = $region48
        $region47: #{tpu_custom_call.1} parent=23 // pred_region
          _
        $region48: #{tpu_custom_call.1} parent=23 // pred_fallthru
          _
      $region24: #{tpu_custom_call.1} parent=5 // pred_fallthru
        _
      %p261 = scmp.le.s32.totalorder 2, %s10
      // Predicated region
      $region49: #{tpu_custom_call.1} parent=5 // pred_check
        %p262 = pneg %p261
      $region50: #{tpu_custom_call.1} parent=5 // pred_check_branch
        %264 = sbr.rel (%p262) target = $region52
      $region51: #{tpu_custom_call.1} parent=5 // pred_region
        %s265 = ssub.s32 %s10, 2
        // Predicated region
        $region53: #{tpu_custom_call.1} parent=51 // pred_check
          %p266 = pneg %p90
        $region54: #{tpu_custom_call.1} parent=51 // pred_check_branch
          %268 = sbr.rel (%p266) target = $region56
        $region55: #{tpu_custom_call.1} parent=51 // pred_region
          %p269 = scmp.lt.s32.totalorder %s23, 1
          %s270 = scalar_select %p269, %s23, 1
          %p271 = scmp.lt.s32.totalorder %s24, 0
          %s272 = scalar_select %p271, %s24, 0
          %s273 = sadd.s32 %s272, %s270
          %s274 = scalar_lea.vmem %s1, %s273
        $region56: #{tpu_custom_call.1} parent=51 // pred_fallthru
          _
      $region52: #{tpu_custom_call.1} parent=5 // pred_fallthru
        _
    $region6: #{tpu_custom_call.1} parent=1 // loop_footer
      %s14 = sadd.s32 1, %s10
    $region7: #{tpu_custom_call.1} parent=1 // loop_footer_branch
      %9 = sbr.rel target = $region3
    $region8: #{tpu_custom_call.1} parent=1 // loop_exit
      _
    %275 = vsyncpa [#allocation4], 1
    %s276 = scalar_lea.sflag [#allocation4], 1
    %277 = vsyncpa %s276, 1

</llo_original>
